<compile_context>
chip_gen: v6e
topology: v6e:2x2x1
jax: 0.10.0
libtpu: 0.0.40
codegen_flags: <defaults>
</compile_context>

<pallas_src>
import functools

import jax
import jax.numpy as jnp
import numpy as np
from jax.experimental import pallas as pl
from jax.experimental.pallas import tpu as pltpu

EPS = 1e-5


def _round_up(x, m):
    return (x + m - 1) // m * m


def _vmem_budget_bytes():
    """Generation-aware VMEM budget: ~3/4 of physical, clamped to [32, 96] MiB."""
    try:
        cap = int(getattr(pltpu.get_tpu_info(), "vmem_capacity_bytes", 0)) or 64 * 2**20
    except Exception:  # no TPU info available -> assume the smallest (v7x: 64 MiB / TC)
        cap = 64 * 2**20
    return max(32 * 2**20, min(cap * 3 // 4, 96 * 2**20))


def _conv_stats_kernel(w_ref, main_ref, halo_ref, mask_ref, conv_ref, stats_ref,
                       *, tm, pw_stride, n_di, n_dj):
    """Pass 1: tap-accumulated conv tile (Cout, tm) + masked per-channel sum / sumsq."""
    t = pl.program_id(1)

    @pl.when(t == 0)
    def _init():
        stats_ref[...] = jnp.zeros_like(stats_ref)

    # Contiguous flat window [chunk_start, chunk_start + tm + HALO) of the phase slab.
    x = jnp.concatenate([main_ref[...], halo_ref[...]], axis=-1)    # (4*Cin, tm+HALO) bf16

    # 2x2 kernel-offset accumulation: all 4 stride-2 phases share the same flat shift,
    # so each offset is one K = 4*Cin matmul on a lane-shifted slice (MXU, f32 acc).
    acc = None
    for di in range(n_di):
        for dj in range(n_dj):
            shift = di * pw_stride + dj
            part = jnp.dot(w_ref[di, dj], x[:, shift:shift + tm],
                           preferred_element_type=jnp.float32)      # (Cout, tm) f32
            acc = part if acc is None else acc + part

    conv_ref[...] = acc.astype(conv_ref.dtype)                      # bf16 intermediate

    # BatchNorm statistics over *valid* output positions only (mask kills the junk
    # rows/cols of the PHxPW grid and the flat padding); one combined (Cout, 2) update.
    masked = acc * mask_ref[...]
    stats_ref[...] += jnp.concatenate(
        [jnp.sum(masked, axis=1, keepdims=True),
         jnp.sum(masked * masked, axis=1, keepdims=True)], axis=1)[None]


def conv_dv_wh_forward(x, weight, gamma, beta,
                       k=(1, 4, 4), s=(1, 2, 2), p=(0, 1, 1), tm=None):
    """Forward of conv_dv_WH.  x: (N, Cin, D, H, W) f32, weight: (Cout, Cin, 1, KH, KW).

    Returns NCDHW float32.  `tm` (flat output positions per grid step) is derived from a
    generation-aware VMEM budget when None (typically 8K-32K), always a multiple of 128.
    """
    kd, kh, kw = k
    sd, sh, sw = s
    pd, ph, pw = p
    assert kd == 1 and sd == 1 and pd == 0, "depth tap must be identity (1, 1, 0)"
    assert sh == 2 and sw == 2 and kh % 2 == 0 and kw % 2 == 0, "needs stride-2 / even kernel"

    N, Cin, D, H, W = x.shape
    Cout = weight.shape[0]
    B = N * D
    OH = (H + 2 * ph - kh) // sh + 1
    OW = (W + 2 * pw - kw) // sw + 1

    # ---- pad H/W (and round to even) so both stride-2 phases have equal extent -------
    Hp, Wp = H + 2 * ph, W + 2 * pw
    Hp_e, Wp_e = Hp + (Hp % 2), Wp + (Wp % 2)
    PH, PW = Hp_e // 2, Wp_e // 2

    xb = jnp.transpose(x, (0, 2, 3, 4, 1)).reshape(B, H, W, Cin).astype(jnp.bfloat16)
    xb = jnp.pad(xb, ((0, 0), (ph, Hp_e - H - ph), (pw, Wp_e - W - pw), (0, 0)))

    # ---- stride-2 phase split (total size == padded input; NOT im2col) ---------------
    # P[(pi*2+pj)*Cin + ci, b*PH*PW + r*PW + c] = xpad[b, 2r+pi, 2c+pj, ci]
    phases = []
    for pi in range(2):
        for pj in range(2):
            sl = xb[:, pi::2, pj::2, :]                                   # (B, PH, PW, Cin)
            phases.append(jnp.transpose(sl, (3, 0, 1, 2)).reshape(Cin, B * PH * PW))
    P = jnp.concatenate(phases, axis=0)                                   # (4*Cin, L)
    L = B * PH * PW
    C4 = 4 * Cin

    # ---- per-offset weights: w_off[di,dj,co,(pi*2+pj)*Cin+ci] = w[co,ci,2di+pi,2dj+pj] -
    n_di, n_dj = kh // 2, kw // 2
    w4 = weight[:, :, 0]                                                  # (Cout, Cin, kh, kw)
    w_off = jnp.transpose(w4.reshape(Cout, Cin, n_di, 2, n_dj, 2),
                          (2, 4, 0, 3, 5, 1)).reshape(n_di, n_dj, Cout, C4)
    w_off = w_off.astype(jnp.bfloat16)

    # ---- tile size from the VMEM budget ----------------------------------------------
    HALO = _round_up((n_di - 1) * PW + (n_dj - 1) + 1, 128)
    budget = _vmem_budget_bytes()
    if tm is None:
        # double-buffered streams (main/conv/mask) + rough in-kernel temporaries, per elem
        per_tm = 2 * (C4 * 2 + Cout * 2 + 2) + 3 * Cout * 4 + 4 * C4 * 2
        tm = (budget // 2) // per_tm
    tm = int(min(tm, 32768, _round_up(L, 128)))
    tm = _round_up(max(tm, HALO, 128), 128)

    n_chunks = -(-L // tm)
    n_chunks += n_chunks % 2                     # even -> splits across 2 cores on v7x
    half = n_chunks // 2
    Lpad = n_chunks * tm

    # main slab, per-chunk halo (first HALO elements of the next chunk), validity mask
    P_ext = jnp.pad(P, ((0, 0), (0, Lpad + tm - L)))
    main = P_ext[:, :Lpad]
    halo = (P_ext[:, tm:tm + Lpad].reshape(C4, n_chunks, tm)[:, :, :HALO]
            .reshape(C4, n_chunks * HALO))
    m_idx = jnp.arange(Lpad, dtype=jnp.int32)
    im = m_idx % (PH * PW)
    valid = ((im // PW) < OH) & ((im % PW) < OW) & (m_idx < L)
    mask = valid.astype(jnp.bfloat16).reshape(1, Lpad)

    flops = 2 * Cout * (n_di * n_dj * C4) * Lpad
    bytes_acc = ((C4 * Lpad + C4 * HALO * n_chunks + Lpad) * 2          # bf16 inputs
                 + Cout * Lpad * 2 + 2 * Cout * 2 * 4)                  # bf16 conv + stats

    # ---- pass 1: tap-accumulated conv + per-core partial BN stats --------------------
    conv2d, stats = pl.pallas_call(
        functools.partial(_conv_stats_kernel, tm=tm, pw_stride=PW, n_di=n_di, n_dj=n_dj),
        out_shape=(jax.ShapeDtypeStruct((Cout, Lpad), jnp.bfloat16),
                   jax.ShapeDtypeStruct((2, Cout, 2), jnp.float32)),
        grid_spec=pltpu.PrefetchScalarGridSpec(
            num_scalar_prefetch=0,
            grid=(2, half),
            in_specs=[
                pl.BlockSpec((n_di, n_dj, Cout, C4), lambda c, t: (0, 0, 0, 0)),  # weights
                pl.BlockSpec((C4, tm), lambda c, t: (0, c * half + t)),           # phase slab
                pl.BlockSpec((C4, HALO), lambda c, t: (0, c * half + t)),         # halo
                pl.BlockSpec((1, tm), lambda c, t: (0, c * half + t)),            # valid mask
            ],
            out_specs=(
                pl.BlockSpec((Cout, tm), lambda c, t: (0, c * half + t)),         # conv (bf16)
                pl.BlockSpec((1, Cout, 2), lambda c, t: (c, 0, 0)),               # per-core stats
            ),
        ),
        compiler_params=pltpu.CompilerParams(
            dimension_semantics=("parallel", "arbitrary"),
            vmem_limit_bytes=int(budget)),
        cost_estimate=pl.CostEstimate(flops=int(flops), transcendentals=0,
                                      bytes_accessed=int(bytes_acc)),
    )(w_off, main, halo, mask)

    # ---- BN affine + ReLU + layout: plain jnp, fused by XLA into one slab pass -------
    stats_sum = jnp.sum(stats, axis=0)                       # (Cout, 2)
    count = jnp.float32(B * OH * OW)
    mean = stats_sum[:, 0] / count
    var = jnp.maximum(stats_sum[:, 1] / count - mean * mean, 0.0)
    scale = gamma.astype(jnp.float32) * jax.lax.rsqrt(var + EPS)
    shift = beta.astype(jnp.float32) - mean * scale

    conv = conv2d[:, :L].reshape(Cout, B, PH, PW)[:, :, :OH, :OW].astype(jnp.float32)
    y = jnp.maximum(conv * scale[:, None, None, None] + shift[:, None, None, None], 0.0)
    return jnp.transpose(y.reshape(Cout, N, D, OH, OW), (1, 0, 2, 3, 4))


def _reference(x, w, gamma, beta):
    conv = jax.lax.conv_general_dilated(
        x, w, window_strides=(1, 2, 2),
        padding=((0, 0), (1, 1), (1, 1)),
        dimension_numbers=("NCDHW", "OIDHW", "NCDHW"))
    mean = jnp.mean(conv, axis=(0, 2, 3, 4), keepdims=True)
    var = jnp.mean(jnp.square(conv - mean), axis=(0, 2, 3, 4), keepdims=True)
    y = (conv - mean) * jax.lax.rsqrt(var + EPS)
    y = y * gamma.reshape(1, -1, 1, 1, 1) + beta.reshape(1, -1, 1, 1, 1)
    return jnp.maximum(y, 0.0)


if __name__ == "__main__":
    # Small shapes consistent with the module: N=2, Cin=4, D=4, H=W=16, Cout=8.
    N, Cin, D, H, W = 2, 4, 4, 16, 16
    Cout = 8
    key = jax.random.PRNGKey(0)
    kx, kw_key = jax.random.split(key)

    x = jax.random.normal(kx, (N, Cin, D, H, W), dtype=jnp.float32)
    # Conv3d weight (OIDHW), kaiming-ish scale; bias=False in the module.
    fan_in = Cin * 1 * 4 * 4
    weight = jax.random.normal(kw_key, (Cout, Cin, 1, 4, 4),
                               dtype=jnp.float32) / np.sqrt(fan_in)
    # BatchNorm3d affine params at PyTorch init: gamma=1, beta=0.
    gamma = jnp.ones((Cout,), dtype=jnp.float32)
    beta = jnp.zeros((Cout,), dtype=jnp.float32)

    fwd = jax.jit(conv_dv_wh_forward)
    out = jax.block_until_ready(fwd(x, weight, gamma, beta))
    ref = jax.block_until_ready(_reference(x, weight, gamma, beta))

    assert out.shape == (N, Cout, D, 8, 8), out.shape
    # bf16 matmul operands + bf16 conv intermediate vs f32 reference -> loose tolerance.
    assert np.allclose(np.asarray(out), np.asarray(ref), atol=3e-2, rtol=2e-2), \
        float(np.max(np.abs(np.asarray(out) - np.asarray(ref))))

    print("KERNEL_OK")
</pallas_src>

<mosaic_0001>
module attributes {stable_mosaic.version = 11 : i64} {
  func.func @_conv_stats_kernel(%arg0: i32, %arg1: i32, %arg2: memref<2x2x8x16xbf16, #tpu.memory_space<vmem>>, %arg3: memref<16x768xbf16, #tpu.memory_space<vmem>>, %arg4: memref<16x128xbf16, #tpu.memory_space<vmem>>, %arg5: memref<1x768xbf16, #tpu.memory_space<vmem>>, %arg6: memref<8x768xbf16, #tpu.memory_space<vmem>>, %arg7: memref<1x8x2xf32, #tpu.memory_space<vmem>>) attributes {dimension_semantics = [#tpu.dimension_semantics<parallel>, #tpu.dimension_semantics<arbitrary>], iteration_bounds = array<i64: 2, 1>, scalar_prefetch = 0 : i64, scratch_operands = 0 : i64, tpu.core_type = #tpu.core_type<tc>, window_params = [{pipeline_mode = #tpu.pipeline_mode<synchronous>, transform_indices = @transform_0, window_bounds = array<i64: 2, 2, 8, 16>}, {transform_indices = @transform_1, window_bounds = array<i64: 16, 768>}, {transform_indices = @transform_2, window_bounds = array<i64: 16, 128>}, {transform_indices = @transform_3, window_bounds = array<i64: 1, 768>}, {transform_indices = @transform_4, window_bounds = array<i64: 8, 768>}, {transform_indices = @transform_5, window_bounds = array<i64: 1, 8, 2>}]} {
    %c0_i32 = arith.constant 0 : i32
    %0 = arith.cmpi eq, %arg1, %c0_i32 : i32
    %1 = arith.extui %0 : i1 to i32
    %c0_i32_0 = arith.constant 0 : i32
    %2 = arith.cmpi ne, %1, %c0_i32_0 : i32
    scf.if %2 {
      %cst_34 = arith.constant 0.000000e+00 : f32
      %41 = vector.broadcast %cst_34 : f32 to vector<1x8x2xf32>
      %c0_35 = arith.constant 0 : index
      %c0_36 = arith.constant 0 : index
      %c0_37 = arith.constant 0 : index
      %42 = vector.load %arg7[%c0_35, %c0_36, %c0_37] : memref<1x8x2xf32, #tpu.memory_space<vmem>>, vector<1x8x2xf32>
      tpu.vector_store %arg7[%c0_35, %c0_36, %c0_37], %41 {strides = array<i32>} : memref<1x8x2xf32, #tpu.memory_space<vmem>>, vector<1x8x2xf32>,
    } else {
    }
    %c0 = arith.constant 0 : index
    %c0_1 = arith.constant 0 : index
    %3 = vector.load %arg3[%c0, %c0_1] : memref<16x768xbf16, #tpu.memory_space<vmem>>, vector<16x768xbf16>
    %c0_2 = arith.constant 0 : index
    %c0_3 = arith.constant 0 : index
    %4 = vector.load %arg4[%c0_2, %c0_3] : memref<16x128xbf16, #tpu.memory_space<vmem>>, vector<16x128xbf16>
    %5 = tpu.concatenate %3, %4 in 1 : vector<16x768xbf16>, vector<16x128xbf16> -> vector<16x896xbf16>
    %c0_4 = arith.constant 0 : index
    %c0_5 = arith.constant 0 : index
    %c0_6 = arith.constant 0 : index
    %c0_7 = arith.constant 0 : index
    %6 = vector.load %arg2[%c0_4, %c0_5, %c0_6, %c0_7] : memref<2x2x8x16xbf16, #tpu.memory_space<vmem>>, vector<1x1x8x16xbf16>
    %7 = vector.shape_cast %6 : vector<1x1x8x16xbf16> to vector<8x16xbf16>
    %8 = vector.extract_strided_slice %5 {offsets = [0, 0], sizes = [16, 768], strides = [1, 1]} : vector<16x896xbf16> to vector<16x768xbf16>
    %cst = arith.constant dense<0.000000e+00> : vector<8x768xf32>
    %9 = tpu.matmul %7, %8, %cst {dimension_numbers = #tpu.dot_dimension_numbers<[1], [0], [0], [1], [0, 0, 1, 1], [], []>} : vector<8x16xbf16>, vector<16x768xbf16>, vector<8x768xf32> -> vector<8x768xf32>
    %c0_8 = arith.constant 0 : index
    %c1 = arith.constant 1 : index
    %c0_9 = arith.constant 0 : index
    %c0_10 = arith.constant 0 : index
    %10 = vector.load %arg2[%c0_8, %c1, %c0_9, %c0_10] : memref<2x2x8x16xbf16, #tpu.memory_space<vmem>>, vector<1x1x8x16xbf16>
    %11 = vector.shape_cast %10 : vector<1x1x8x16xbf16> to vector<8x16xbf16>
    %12 = vector.extract_strided_slice %5 {offsets = [0, 1], sizes = [16, 768], strides = [1, 1]} : vector<16x896xbf16> to vector<16x768xbf16>
    %cst_11 = arith.constant dense<0.000000e+00> : vector<8x768xf32>
    %13 = tpu.matmul %11, %12, %cst_11 {dimension_numbers = #tpu.dot_dimension_numbers<[1], [0], [0], [1], [0, 0, 1, 1], [], []>} : vector<8x16xbf16>, vector<16x768xbf16>, vector<8x768xf32> -> vector<8x768xf32>
    %14 = arith.addf %9, %13 : vector<8x768xf32>
    %c1_12 = arith.constant 1 : index
    %c0_13 = arith.constant 0 : index
    %c0_14 = arith.constant 0 : index
    %c0_15 = arith.constant 0 : index
    %15 = vector.load %arg2[%c1_12, %c0_13, %c0_14, %c0_15] : memref<2x2x8x16xbf16, #tpu.memory_space<vmem>>, vector<1x1x8x16xbf16>
    %16 = vector.shape_cast %15 : vector<1x1x8x16xbf16> to vector<8x16xbf16>
    %17 = vector.extract_strided_slice %5 {offsets = [0, 9], sizes = [16, 768], strides = [1, 1]} : vector<16x896xbf16> to vector<16x768xbf16>
    %cst_16 = arith.constant dense<0.000000e+00> : vector<8x768xf32>
    %18 = tpu.matmul %16, %17, %cst_16 {dimension_numbers = #tpu.dot_dimension_numbers<[1], [0], [0], [1], [0, 0, 1, 1], [], []>} : vector<8x16xbf16>, vector<16x768xbf16>, vector<8x768xf32> -> vector<8x768xf32>
    %19 = arith.addf %14, %18 : vector<8x768xf32>
    %c1_17 = arith.constant 1 : index
    %c1_18 = arith.constant 1 : index
    %c0_19 = arith.constant 0 : index
    %c0_20 = arith.constant 0 : index
    %20 = vector.load %arg2[%c1_17, %c1_18, %c0_19, %c0_20] : memref<2x2x8x16xbf16, #tpu.memory_space<vmem>>, vector<1x1x8x16xbf16>
    %21 = vector.shape_cast %20 : vector<1x1x8x16xbf16> to vector<8x16xbf16>
    %22 = vector.extract_strided_slice %5 {offsets = [0, 10], sizes = [16, 768], strides = [1, 1]} : vector<16x896xbf16> to vector<16x768xbf16>
    %cst_21 = arith.constant dense<0.000000e+00> : vector<8x768xf32>
    %23 = tpu.matmul %21, %22, %cst_21 {dimension_numbers = #tpu.dot_dimension_numbers<[1], [0], [0], [1], [0, 0, 1, 1], [], []>} : vector<8x16xbf16>, vector<16x768xbf16>, vector<8x768xf32> -> vector<8x768xf32>
    %24 = arith.addf %19, %23 : vector<8x768xf32>
    %25 = arith.truncf %24 : vector<8x768xf32> to vector<8x768xbf16>
    %c0_22 = arith.constant 0 : index
    %c0_23 = arith.constant 0 : index
    %26 = vector.load %arg6[%c0_22, %c0_23] : memref<8x768xbf16, #tpu.memory_space<vmem>>, vector<8x768xbf16>
    tpu.vector_store %arg6[%c0_22, %c0_23], %25 {strides = array<i32>} : memref<8x768xbf16, #tpu.memory_space<vmem>>, vector<8x768xbf16>,
    %c0_24 = arith.constant 0 : index
    %c0_25 = arith.constant 0 : index
    %27 = vector.load %arg5[%c0_24, %c0_25] : memref<1x768xbf16, #tpu.memory_space<vmem>>, vector<1x768xbf16>
    %28 = arith.extf %27 : vector<1x768xbf16> to vector<1x768xf32>
    %29 = vector.broadcast %28 : vector<1x768xf32> to vector<8x768xf32>
    %30 = arith.mulf %24, %29 : vector<8x768xf32>
    %c0_26 = arith.constant 0 : index
    %c0_27 = arith.constant 0 : index
    %c0_28 = arith.constant 0 : index
    %31 = vector.load %arg7[%c0_26, %c0_27, %c0_28] : memref<1x8x2xf32, #tpu.memory_space<vmem>>, vector<1x8x2xf32>
    %cst_29 = arith.constant dense<0.000000e+00> : vector<8xf32>
    %32 = vector.multi_reduction <add>, %30, %cst_29 [1] : vector<8x768xf32> to vector<8xf32>
    %33 = vector.shape_cast %32 : vector<8xf32> to vector<8x1xf32>
    %34 = arith.mulf %30, %30 : vector<8x768xf32>
    %cst_30 = arith.constant dense<0.000000e+00> : vector<8xf32>
    %35 = vector.multi_reduction <add>, %34, %cst_30 [1] : vector<8x768xf32> to vector<8xf32>
    %36 = vector.shape_cast %35 : vector<8xf32> to vector<8x1xf32>
    %37 = tpu.concatenate %33, %36 in 1 : vector<8x1xf32>, vector<8x1xf32> -> vector<8x2xf32>
    %38 = vector.shape_cast %37 : vector<8x2xf32> to vector<1x8x2xf32>
    %39 = arith.addf %31, %38 : vector<1x8x2xf32>
    %c0_31 = arith.constant 0 : index
    %c0_32 = arith.constant 0 : index
    %c0_33 = arith.constant 0 : index
    %40 = vector.load %arg7[%c0_31, %c0_32, %c0_33] : memref<1x8x2xf32, #tpu.memory_space<vmem>>, vector<1x8x2xf32>
    tpu.vector_store %arg7[%c0_31, %c0_32, %c0_33], %39 {strides = array<i32>} : memref<1x8x2xf32, #tpu.memory_space<vmem>>, vector<1x8x2xf32>,
    return
  }
  func.func @transform_0(%arg0: i32, %arg1: i32) -> (i32, i32, i32, i32) {
    %c0_i32 = arith.constant 0 : i32
    %c0_i32_0 = arith.constant 0 : i32
    %c0_i32_1 = arith.constant 0 : i32
    %c0_i32_2 = arith.constant 0 : i32
    %c0_i32_3 = arith.constant 0 : i32
    return %c0_i32, %c0_i32_0, %c0_i32_1, %c0_i32_2 : i32, i32, i32, i32
  }
  func.func @transform_1(%arg0: i32, %arg1: i32) -> (i32, i32) {
    %c1_i32 = arith.constant 1 : i32
    %0 = arith.muli %arg0, %c1_i32 : i32
    %1 = arith.addi %0, %arg1 : i32
    %c0_i32 = arith.constant 0 : i32
    %c0_i32_0 = arith.constant 0 : i32
    return %c0_i32, %1 : i32, i32
  }
  func.func @transform_2(%arg0: i32, %arg1: i32) -> (i32, i32) {
    %c1_i32 = arith.constant 1 : i32
    %0 = arith.muli %arg0, %c1_i32 : i32
    %1 = arith.addi %0, %arg1 : i32
    %c0_i32 = arith.constant 0 : i32
    %c0_i32_0 = arith.constant 0 : i32
    return %c0_i32, %1 : i32, i32
  }
  func.func @transform_3(%arg0: i32, %arg1: i32) -> (i32, i32) {
    %c1_i32 = arith.constant 1 : i32
    %0 = arith.muli %arg0, %c1_i32 : i32
    %1 = arith.addi %0, %arg1 : i32
    %c0_i32 = arith.constant 0 : i32
    %c0_i32_0 = arith.constant 0 : i32
    return %c0_i32, %1 : i32, i32
  }
  func.func @transform_4(%arg0: i32, %arg1: i32) -> (i32, i32) {
    %c1_i32 = arith.constant 1 : i32
    %0 = arith.muli %arg0, %c1_i32 : i32
    %1 = arith.addi %0, %arg1 : i32
    %c0_i32 = arith.constant 0 : i32
    %c0_i32_0 = arith.constant 0 : i32
    return %c0_i32, %1 : i32, i32
  }
  func.func @transform_5(%arg0: i32, %arg1: i32) -> (i32, i32, i32) {
    %c0_i32 = arith.constant 0 : i32
    %c0_i32_0 = arith.constant 0 : i32
    %c0_i32_1 = arith.constant 0 : i32
    return %arg0, %c0_i32, %c0_i32_0 : i32, i32, i32
  }
}

</mosaic_0001>

<llo_original>
// kernel: conv_dv_wh_forward.1
$region0: #{conv_dv_wh_forward.1}
  #allocation0 [shape = 'u32[]', space=smem, size = 0x4, offset = 0x4, fixed_abs, tag = 'smem constant byte address 0x4 - core index']
  #allocation1 [shape = 'u32[144,128]{1,0:T(1,128)}', space=vmem, size = 0x12000, scoped, tag = 'internal scratch']
  %s0 = inlined_call_operand.vmem [shape: bf16[2,2,8,16], index: 0, kind: input, shape index: {}]
  %s1 = inlined_call_operand.vmem [shape: bf16[16,1536], index: 1, kind: input, shape index: {}]
  %s2 = inlined_call_operand.vmem [shape: bf16[16,256], index: 2, kind: input, shape index: {}]
  %s3 = inlined_call_operand.vmem [shape: bf16[1,1536], index: 3, kind: input, shape index: {}]
  %s4 = inlined_call_operand.vmem [shape: bf16[8,1536], index: 4, kind: output, shape index: {0}]
  %s5 = inlined_call_operand.vmem [shape: f32[2,8,2], index: 5, kind: output, shape index: {1}]
  %6 = xla_tuple %s4, %s5
  %s7 = sld [smem:[#allocation0]]
  $region125: #{conv_dv_wh_forward.1} parent=0
    _
  %s9 = ssub.s32 1, %s7
  %s10 = scalar_select 0, %s9, %s7
  $region1: #{conv_dv_wh_forward.1} parent=0
    #allocation2 [shape = 'u8[49152]{0}', space=vmem, size = 0xc000, scoped, tag = 'input window, operand 1']
    #allocation3 [shape = 'u8[8192]{0}', space=vmem, size = 0x2000, scoped, tag = 'input window, operand 2']
    loop: start=0, step=1, limit=4
    $region2: #{conv_dv_wh_forward.1} parent=1 // loop_pre_header
      _
    $region3: #{conv_dv_wh_forward.1} parent=1 // loop_header
      %s12 = sphi 0, %s16
      %p13 = scmp.ge.s32.totalorder %s12, 4
      %s19 = sphi 0, %s31
      %s20 = sphi 0, %s27
      %s21 = sphi 0, %s19
      %s22 = sphi 0, %s20
      %s23 = sphi 0, %s21
      %s24 = sphi 0, %s22
      %s32 = sphi 0, %s32
      %s34 = sphi 0, %s32
      %s35 = sphi 0, %s34
      %s49 = sphi 0, %s35
      %s57 = sphi 0, %s59
      %s60 = sphi 0, %s57
      %s61 = sphi 0, %s60
      %s77 = sphi 0, %s61
      %s85 = sphi 0, %s87
      %s88 = sphi 0, %s85
      %s89 = sphi 0, %s88
      %s105 = sphi 0, %s89
      %s113 = sphi 0, %s115
      %s116 = sphi 0, %s113
      %s117 = sphi 0, %s116
      %s133 = sphi 0, %s117
      %s141 = sphi 0, %s143
      %s144 = sphi 0, %s141
      %s145 = sphi 0, %s144
      %s161 = sphi 0, %s145
      %s167 = sphi 0, %s169
      %s170 = sphi 0, %s167
      %s171 = sphi 0, %s170
      %s187 = sphi 0, %s171
    $region4: #{conv_dv_wh_forward.1} parent=1 // loop_header_branch
      %15 = sbr.rel (%p13) target = $region8
    $region5: #{conv_dv_wh_forward.1} parent=1 // loop_body
      %s17 = ssub.s32 %s12, 1
      %s18 = ssub.s32 %s12, 2
      %s25 = sadd.s32 1, %s20
      %p26 = scmp.ge.s32.totalorder %s25, 1
      %s27 = scalar_select %p26, 0, %s25
      %s28 = sadd.s32 1, %s19
      %s29 = scalar_select %p26, %s28, %s19
      %p30 = scmp.ge.s32.totalorder %s29, 2
      %s31 = scalar_select %p30, 0, %s29
      %s33 = sadd.s32 %s32, 1
      %p36 = scmp.eq.s32.totalorder %s12, 1
      %p37 = scmp.ne.s32.totalorder %s32, %s34
      %p38 = scmp.eq.s32.totalorder %s12, 0
      %p39 = por %p37, %p38
      %p40 = scmp.ne.s32.totalorder %s32, %s34
      %p41 = scmp.eq.s32.totalorder %s17, 1
      %p42 = por %p40, %p41
      %p43 = scmp.ne.s32.totalorder %s34, %s35
      %p44 = scmp.eq.s32.totalorder %s17, 0
      %p45 = por %p43, %p44
      %p46 = scmp.ne.s32.totalorder %s34, %s35
      %p47 = scmp.eq.s32.totalorder %s18, 1
      %p48 = por %p46, %p47
      %p50 = scmp.ne.s32.totalorder %s35, %s49
      %p51 = scmp.eq.s32.totalorder %s18, 0
      %p52 = por %p50, %p51
      %s53 = sadd.s32 %s19, %s20
      %s54 = sadd.s32 %s31, %s27
      %s55 = ssub.s32 %s53, %s54
      %p56 = scmp.eq.s32.totalorder %s55, 0
      %s58 = sadd.s32 %s57, 1
      %s59 = scalar_select %p56, %s57, %s58
      %p62 = pneg %p56
      %p63 = scmp.eq.s32.totalorder %s12, 1
      %p64 = por %p62, %p63
      %p65 = scmp.ne.s32.totalorder %s57, %s60
      %p66 = scmp.eq.s32.totalorder %s12, 0
      %p67 = por %p65, %p66
      %p68 = scmp.ne.s32.totalorder %s57, %s60
      %p69 = scmp.eq.s32.totalorder %s17, 1
      %p70 = por %p68, %p69
      %p71 = scmp.ne.s32.totalorder %s60, %s61
      %p72 = scmp.eq.s32.totalorder %s17, 0
      %p73 = por %p71, %p72
      %p74 = scmp.ne.s32.totalorder %s60, %s61
      %p75 = scmp.eq.s32.totalorder %s18, 1
      %p76 = por %p74, %p75
      %p78 = scmp.ne.s32.totalorder %s61, %s77
      %p79 = scmp.eq.s32.totalorder %s18, 0
      %p80 = por %p78, %p79
      %s81 = sadd.s32 %s19, %s20
      %s82 = sadd.s32 %s31, %s27
      %s83 = ssub.s32 %s81, %s82
      %p84 = scmp.eq.s32.totalorder %s83, 0
      %s86 = sadd.s32 %s85, 1
      %s87 = scalar_select %p84, %s85, %s86
      %p90 = pneg %p84
      %p91 = scmp.eq.s32.totalorder %s12, 1
      %p92 = por %p90, %p91
      %p93 = scmp.ne.s32.totalorder %s85, %s88
      %p94 = scmp.eq.s32.totalorder %s12, 0
      %p95 = por %p93, %p94
      %p96 = scmp.ne.s32.totalorder %s85, %s88
      %p97 = scmp.eq.s32.totalorder %s17, 1
      %p98 = por %p96, %p97
      %p99 = scmp.ne.s32.totalorder %s88, %s89
      %p100 = scmp.eq.s32.totalorder %s17, 0
      %p101 = por %p99, %p100
      %p102 = scmp.ne.s32.totalorder %s88, %s89
      %p103 = scmp.eq.s32.totalorder %s18, 1
      %p104 = por %p102, %p103
      %p106 = scmp.ne.s32.totalorder %s89, %s105
      %p107 = scmp.eq.s32.totalorder %s18, 0
      %p108 = por %p106, %p107
      %s109 = sadd.s32 %s19, %s20
      %s110 = sadd.s32 %s31, %s27
      %s111 = ssub.s32 %s109, %s110
      %p112 = scmp.eq.s32.totalorder %s111, 0
      %s114 = sadd.s32 %s113, 1
      %s115 = scalar_select %p112, %s113, %s114
      %p118 = pneg %p112
      %p119 = scmp.eq.s32.totalorder %s12, 1
      %p120 = por %p118, %p119
      %p121 = scmp.ne.s32.totalorder %s113, %s116
      %p122 = scmp.eq.s32.totalorder %s12, 0
      %p123 = por %p121, %p122
      %p124 = scmp.ne.s32.totalorder %s113, %s116
      %p125 = scmp.eq.s32.totalorder %s17, 1
      %p126 = por %p124, %p125
      %p127 = scmp.ne.s32.totalorder %s116, %s117
      %p128 = scmp.eq.s32.totalorder %s17, 0
      %p129 = por %p127, %p128
      %p130 = scmp.ne.s32.totalorder %s116, %s117
      %p131 = scmp.eq.s32.totalorder %s18, 1
      %p132 = por %p130, %p131
      %p134 = scmp.ne.s32.totalorder %s117, %s133
      %p135 = scmp.eq.s32.totalorder %s18, 0
      %p136 = por %p134, %p135
      %s137 = sadd.s32 %s19, %s20
      %s138 = sadd.s32 %s31, %s27
      %s139 = ssub.s32 %s137, %s138
      %p140 = scmp.eq.s32.totalorder %s139, 0
      %s142 = sadd.s32 %s141, 1
      %s143 = scalar_select %p140, %s141, %s142
      %p146 = pneg %p140
      %p147 = scmp.eq.s32.totalorder %s12, 1
      %p148 = por %p146, %p147
      %p149 = scmp.ne.s32.totalorder %s141, %s144
      %p150 = scmp.eq.s32.totalorder %s12, 0
      %p151 = por %p149, %p150
      %p152 = scmp.ne.s32.totalorder %s141, %s144
      %p153 = scmp.eq.s32.totalorder %s17, 1
      %p154 = por %p152, %p153
      %p155 = scmp.ne.s32.totalorder %s144, %s145
      %p156 = scmp.eq.s32.totalorder %s17, 0
      %p157 = por %p155, %p156
      %p158 = scmp.ne.s32.totalorder %s144, %s145
      %p159 = scmp.eq.s32.totalorder %s18, 1
      %p160 = por %p158, %p159
      %p162 = scmp.ne.s32.totalorder %s145, %s161
      %p163 = scmp.eq.s32.totalorder %s18, 0
      %p164 = por %p162, %p163
      %s165 = ssub.s32 %s19, %s31
      %p166 = scmp.eq.s32.totalorder %s165, 0
      %s168 = sadd.s32 %s167, 1
      %s169 = scalar_select %p166, %s167, %s168
      %p172 = pneg %p166
      %p173 = scmp.eq.s32.totalorder %s12, 1
      %p174 = por %p172, %p173
      %p175 = scmp.ne.s32.totalorder %s167, %s170
      %p176 = scmp.eq.s32.totalorder %s12, 0
      %p177 = por %p175, %p176
      %p178 = scmp.ne.s32.totalorder %s167, %s170
      %p179 = scmp.eq.s32.totalorder %s17, 1
      %p180 = por %p178, %p179
      %p181 = scmp.ne.s32.totalorder %s170, %s171
      %p182 = scmp.eq.s32.totalorder %s17, 0
      %p183 = por %p181, %p182
      %p184 = scmp.ne.s32.totalorder %s170, %s171
      %p185 = scmp.eq.s32.totalorder %s18, 1
      %p186 = por %p184, %p185
      %p188 = scmp.ne.s32.totalorder %s171, %s187
      %p189 = scmp.eq.s32.totalorder %s18, 0
      %p190 = por %p188, %p189
      %p191 = scmp.le.s32.totalorder 1, %s12
      %p192 = scmp.lt.s32.totalorder %s12, 3
      %p193 = pnand %p191, %p192
      %p194 = pneg %p193
      // Predicated region
      $region9: #{conv_dv_wh_forward.1} parent=5 // pred_check
        _
      $region10: #{conv_dv_wh_forward.1} parent=5 // pred_check_branch
        %196 = sbr.rel (%p193) target = $region12
      $region11: #{conv_dv_wh_forward.1} parent=5 // pred_region
        %s197 = ssub.s32 %s12, 1
        // Predicated region
        $region13: #{conv_dv_wh_forward.1} parent=11 // pred_check
          %p198 = pneg %p45
        $region14: #{conv_dv_wh_forward.1} parent=11 // pred_check_branch
          %200 = sbr.rel (%p198) target = $region16
        $region15: #{conv_dv_wh_forward.1} parent=11 // pred_region
          _
        $region16: #{conv_dv_wh_forward.1} parent=11 // pred_fallthru
          _
      $region12: #{conv_dv_wh_forward.1} parent=5 // pred_fallthru
        _
      %p201 = scmp.lt.s32.totalorder %s12, 2
      // Predicated region
      $region17: #{conv_dv_wh_forward.1} parent=5 // pred_check
        %p202 = pneg %p201
      $region18: #{conv_dv_wh_forward.1} parent=5 // pred_check_branch
        %204 = sbr.rel (%p202) target = $region20
      $region19: #{conv_dv_wh_forward.1} parent=5 // pred_region
        // Predicated region
        $region21: #{conv_dv_wh_forward.1} parent=19 // pred_check
          %p205 = pneg %p67
        $region22: #{conv_dv_wh_forward.1} parent=19 // pred_check_branch
          %207 = sbr.rel (%p205) target = $region24
        $region23: #{conv_dv_wh_forward.1} parent=19 // pred_region
          %s208 = sand.u32 %s57, 1
          %s209 = sand.u32 %s57, 1
          %s210 = smul.addr %s209, 48
          %s211 = scalar_lea.vmem [#allocation2], %s210
          %s212 = sadd.s32 %s19, %s20
          %s213 = smul.u32 6, %s212
          %s214 = smul.addr %s213, 4
          %s215 = scalar_lea.vmem %s1, %s214
          // Predicated region
          $region25: #{conv_dv_wh_forward.1} parent=23 // pred_check
            _
          $region26: #{conv_dv_wh_forward.1} parent=23 // pred_check_branch
            %217 = sbr.rel (0) target = $region28
          $region27: #{conv_dv_wh_forward.1} parent=23 // pred_region
            // Predicated region
            $region29: #{conv_dv_wh_forward.1} parent=27 // pred_check
              _
            $region30: #{conv_dv_wh_forward.1} parent=27 // pred_check_branch
              %219 = sbr.rel (0) target = $region32
            $region31: #{conv_dv_wh_forward.1} parent=27 // pred_region
              loop: start=0, step=1, limit=1
              $region33: #{conv_dv_wh_forward.1} parent=31 // loop_pre_header
                _
              $region34: #{conv_dv_wh_forward.1} parent=31 // loop_header
                %s221 = sphi 0, %s225
                %p222 = scmp.ge.s32.totalorder %s221, 1
                %s226 = sphi %s215, %s215
                %s227 = sphi %s211, %s211
              $region35: #{conv_dv_wh_forward.1} parent=31 // loop_header_branch
                %224 = sbr.rel (%p222) target = $region39
              $region36: #{conv_dv_wh_forward.1} parent=31 // loop_body
                %v228 = vld [vmem:[%s226] sm:$0xff]
                %229 = vst [vmem:[%s227] sm:$0xff] %v228
                %v230 = vld [vmem:[%s226 + $0x8] sm:$0xff]
                %231 = vst [vmem:[%s227 + $0x8] sm:$0xff] %v230
                %v232 = vld [vmem:[%s226 + $0x10] sm:$0xff]
                %233 = vst [vmem:[%s227 + $0x10] sm:$0xff] %v232
                %v234 = vld [vmem:[%s226 + $0x30] sm:$0xff]
                %235 = vst [vmem:[%s227 + $0x18] sm:$0xff] %v234
                %v236 = vld [vmem:[%s226 + $0x38] sm:$0xff]
                %237 = vst [vmem:[%s227 + $0x20] sm:$0xff] %v236
                %v238 = vld [vmem:[%s226 + $0x40] sm:$0xff]
                %239 = vst [vmem:[%s227 + $0x28] sm:$0xff] %v238
              $region37: #{conv_dv_wh_forward.1} parent=31 // loop_footer
                %s225 = sadd.s32 1, %s221
              $region38: #{conv_dv_wh_forward.1} parent=31 // loop_footer_branch
                %220 = sbr.rel target = $region34
              $region39: #{conv_dv_wh_forward.1} parent=31 // loop_exit
                _
            $region32: #{conv_dv_wh_forward.1} parent=27 // pred_fallthru
              _
            // Predicated region
            $region40: #{conv_dv_wh_forward.1} parent=27 // pred_check
              _
            $region41: #{conv_dv_wh_forward.1} parent=27 // pred_check_branch
              %241 = sbr.rel target = $region43
            $region42: #{conv_dv_wh_forward.1} parent=27 // pred_region
              _
            $region43: #{conv_dv_wh_forward.1} parent=27 // pred_fallthru
              _
          $region28: #{conv_dv_wh_forward.1} parent=23 // pred_fallthru
            _
          %242 = vnop
        $region24: #{conv_dv_wh_forward.1} parent=19 // pred_fallthru
          _
        // Predicated region
        $region44: #{conv_dv_wh_forward.1} parent=19 // pred_check
          %p243 = pneg %p95
        $region45: #{conv_dv_wh_forward.1} parent=19 // pred_check_branch
          %245 = sbr.rel (%p243) target = $region47
        $region46: #{conv_dv_wh_forward.1} parent=19 // pred_region
          %s246 = sand.u32 %s85, 1
          %s247 = sand.u32 %s85, 1
          %s248 = smul.addr %s247, 8
          %s249 = scalar_lea.vmem [#allocation3], %s248
          %s250 = sadd.s32 %s19, %s20
          %s251 = smul.addr %s250, 4
          %s252 = scalar_lea.vmem %s2, %s251
          // Predicated region
          $region48: #{conv_dv_wh_forward.1} parent=46 // pred_check
            _
          $region49: #{conv_dv_wh_forward.1} parent=46 // pred_check_branch
            %254 = sbr.rel (0) target = $region51
          $region50: #{conv_dv_wh_forward.1} parent=46 // pred_region
            // Predicated region
            $region52: #{conv_dv_wh_forward.1} parent=50 // pred_check
              _
            $region53: #{conv_dv_wh_forward.1} parent=50 // pred_check_branch
              %256 = sbr.rel target = $region55
            $region54: #{conv_dv_wh_forward.1} parent=50 // pred_region
              // Predicated region
              $region67: #{conv_dv_wh_forward.1} parent=54 // pred_check
                _
              $region68: #{conv_dv_wh_forward.1} parent=54 // pred_check_branch
                %274 = sbr.rel (0) target = $region70
              $region69: #{conv_dv_wh_forward.1} parent=54 // pred_region
                loop: start=0, step=1, limit=1
                $region71: #{conv_dv_wh_forward.1} parent=69 // loop_pre_header
                  _
                $region72: #{conv_dv_wh_forward.1} parent=69 // loop_header
                  %s276 = sphi 0, %s280
                  %p277 = scmp.ge.s32.totalorder %s276, 1
                  %s281 = sphi %s252, %s252
                  %s282 = sphi %s249, %s249
                $region73: #{conv_dv_wh_forward.1} parent=69 // loop_header_branch
                  %279 = sbr.rel (%p277) target = $region77
                $region74: #{conv_dv_wh_forward.1} parent=69 // loop_body
                  _
                $region75: #{conv_dv_wh_forward.1} parent=69 // loop_footer
                  %s280 = sadd.s32 1, %s276
                $region76: #{conv_dv_wh_forward.1} parent=69 // loop_footer_branch
                  %275 = sbr.rel target = $region72
                $region77: #{conv_dv_wh_forward.1} parent=69 // loop_exit
                  _
                %s284 = ssub.s32 16, 1
                loop: start=0, step=1, limit=1
                $region78: #{conv_dv_wh_forward.1} parent=69 // loop_pre_header
                  _
                $region79: #{conv_dv_wh_forward.1} parent=69 // loop_header
                  %s286 = sphi 0, %s290
                  %p287 = scmp.ge.s32.totalorder %s286, 1
                  %s291 = sphi %s252, %s252
                  %s292 = sphi %s249, %s249
                $region80: #{conv_dv_wh_forward.1} parent=69 // loop_header_branch
                  %289 = sbr.rel (%p287) target = $region84
                $region81: #{conv_dv_wh_forward.1} parent=69 // loop_body
                  %v293 = vld [vmem:[%s291] sm:%s284]
                  %294 = vst [vmem:[%s292] sm:%s284] %v293
                  %v295 = vld [vmem:[%s291 + $0x8] sm:%s284]
                  %296 = vst [vmem:[%s292 + $0x4] sm:%s284] %v295
                $region82: #{conv_dv_wh_forward.1} parent=69 // loop_footer
                  %s290 = sadd.s32 1, %s286
                $region83: #{conv_dv_wh_forward.1} parent=69 // loop_footer_branch
                  %285 = sbr.rel target = $region79
                $region84: #{conv_dv_wh_forward.1} parent=69 // loop_exit
                  _
              $region70: #{conv_dv_wh_forward.1} parent=54 // pred_fallthru
                _
            $region55: #{conv_dv_wh_forward.1} parent=50 // pred_fallthru
              _
            // Predicated region
            $region56: #{conv_dv_wh_forward.1} parent=50 // pred_check
              _
            $region57: #{conv_dv_wh_forward.1} parent=50 // pred_check_branch
              %258 = sbr.rel (0) target = $region59
            $region58: #{conv_dv_wh_forward.1} parent=50 // pred_region
              %s260 = ssub.s32 16, 1
              loop: start=0, step=1, limit=1
              $region60: #{conv_dv_wh_forward.1} parent=58 // loop_pre_header
                _
              $region61: #{conv_dv_wh_forward.1} parent=58 // loop_header
                %s262 = sphi 0, %s266
                %p263 = scmp.ge.s32.totalorder %s262, 1
                %s267 = sphi %s252, %s252
                %s268 = sphi %s249, %s249
              $region62: #{conv_dv_wh_forward.1} parent=58 // loop_header_branch
                %265 = sbr.rel (%p263) target = $region66
              $region63: #{conv_dv_wh_forward.1} parent=58 // loop_body
                %v269 = vld [vmem:[%s267] sm:%s260]
                %270 = vst [vmem:[%s268] sm:%s260] %v269
                %v271 = vld [vmem:[%s267 + $0x8] sm:%s260]
                %272 = vst [vmem:[%s268 + $0x4] sm:%s260] %v271
              $region64: #{conv_dv_wh_forward.1} parent=58 // loop_footer
                %s266 = sadd.s32 1, %s262
              $region65: #{conv_dv_wh_forward.1} parent=58 // loop_footer_branch
                %261 = sbr.rel target = $region61
              $region66: #{conv_dv_wh_forward.1} parent=58 // loop_exit
                _
            $region59: #{conv_dv_wh_forward.1} parent=50 // pred_fallthru
              _
          $region51: #{conv_dv_wh_forward.1} parent=46 // pred_fallthru
            _
          %297 = vnop
        $region47: #{conv_dv_wh_forward.1} parent=19 // pred_fallthru
          _
        // Predicated region
        $region85: #{conv_dv_wh_forward.1} parent=19 // pred_check
          %p298 = pneg %p123
        $region86: #{conv_dv_wh_forward.1} parent=19 // pred_check_branch
          %300 = sbr.rel (%p298) target = $region88
        $region87: #{conv_dv_wh_forward.1} parent=19 // pred_region
          %s301 = sadd.s32 %s19, %s20
          %s302 = smul.u32 6, %s301
          %p303 = scmp.lt.s32.totalorder %s302, 11
          %s304 = scalar_select %p303, %s302, 11
          %s305 = scalar_lea.vmem %s3, %s304
          %s306 = sadd.s32 %s19, %s20
          %s307 = smul.u32 6, %s306
        $region88: #{conv_dv_wh_forward.1} parent=19 // pred_fallthru
          _
      $region20: #{conv_dv_wh_forward.1} parent=5 // pred_fallthru
        _
      %p308 = scmp.le.s32.totalorder 1, %s12
      %p309 = scmp.lt.s32.totalorder %s12, 3
      %p310 = pnand %p308, %p309
      %p311 = pneg %p310
      // Predicated region
      $region89: #{conv_dv_wh_forward.1} parent=5 // pred_check
        _
      $region90: #{conv_dv_wh_forward.1} parent=5 // pred_check_branch
        %313 = sbr.rel (%p310) target = $region92
      $region91: #{conv_dv_wh_forward.1} parent=5 // pred_region
        %s314 = ssub.s32 %s12, 1
        %s315 = sand.u32 %s60, 1
        %s316 = sand.u32 %s60, 1
        %s317 = smul.addr %s316, 48
        %s318 = scalar_lea.vmem [#allocation2], %s317
        // Predicated region
        $region93: #{conv_dv_wh_forward.1} parent=91 // pred_check
          %p319 = pneg %p73
        $region94: #{conv_dv_wh_forward.1} parent=91 // pred_check_branch
          %321 = sbr.rel (%p319) target = $region96
        $region95: #{conv_dv_wh_forward.1} parent=91 // pred_region
          _
        $region96: #{conv_dv_wh_forward.1} parent=91 // pred_fallthru
          _
        %s322 = sand.u32 %s88, 1
        %s323 = sand.u32 %s88, 1
        %s324 = smul.addr %s323, 8
        %s325 = scalar_lea.vmem [#allocation3], %s324
        // Predicated region
        $region97: #{conv_dv_wh_forward.1} parent=91 // pred_check
          %p326 = pneg %p101
        $region98: #{conv_dv_wh_forward.1} parent=91 // pred_check_branch
          %328 = sbr.rel (%p326) target = $region100
        $region99: #{conv_dv_wh_forward.1} parent=91 // pred_region
          _
        $region100: #{conv_dv_wh_forward.1} parent=91 // pred_fallthru
          _
        %p329 = pneg %p45
        %p330 = pneg %p42
        %s331 = sand.u32 %s60, 1
        %s332 = sand.u32 %s60, 1
        %s333 = smul.addr %s332, 48
        %s334 = scalar_lea.vmem [#allocation2], %s333
        %p335 = pneg %p73
        %p336 = pneg %p70
        %s337 = sand.u32 %s88, 1
        %s338 = sand.u32 %s88, 1
        %s339 = smul.addr %s338, 8
        %s340 = scalar_lea.vmem [#allocation3], %s339
        %p341 = pneg %p101
        %p342 = pneg %p98
        %s343 = sadd.s32 %s21, %s22
        %s344 = smul.u32 6, %s343
        %p345 = scmp.lt.s32.totalorder %s344, 11
        %s346 = scalar_select %p345, %s344, 11
        %s347 = scalar_lea.vmem %s3, %s346
        %p348 = pneg %p129
        %p349 = pneg %p126
        %p350 = pneg %p157
        %p351 = pneg %p154
        %s352 = sadd.s32 %s21, %s22
        %s353 = smul.u32 6, %s352
        %p354 = scmp.lt.s32.totalorder %s353, 11
        %s355 = scalar_select %p354, %s353, 11
        %s356 = smul.addr %s355, 4
        %s357 = scalar_lea.vmem %s4, %s356
        %p358 = pneg %p183
        %p359 = pneg %p180
        %p360 = scmp.lt.s32.totalorder %s21, 1
        %s361 = scalar_select %p360, %s21, 1
        %s362 = smul.addr %s361, 8
        %s363 = scalar_lea.vmem %s5, %s362
        %s364 = sadd.s32 %s21, %s22
        %s365 = smul.u32 6, %s364
        %s366 = sadd.s32 %s21, %s22
        %s367 = sadd.s32 %s21, %s22
        %s368 = smul.u32 6, %s367
        %p369 = scmp.lt.s32.totalorder %s368, 11
        %s370 = scalar_select %p369, %s368, 11
        %s371 = scalar_lea.vmem %s3, %s370
        %s372 = sadd.s32 %s21, %s22
        %s373 = smul.u32 6, %s372
        %s374 = sadd.s32 %s21, %s22
        %s375 = smul.u32 6, %s374
        %p376 = scmp.lt.s32.totalorder %s375, 11
        %s377 = scalar_select %p376, %s375, 11
        %s378 = smul.addr %s377, 4
        %s379 = scalar_lea.vmem %s4, %s378
        %s380 = sadd.s32 %s21, %s22
        %s381 = smul.u32 6, %s380
        %p382 = scmp.lt.s32.totalorder %s21, 1
        %s383 = scalar_select %p382, %s21, 1
        %s384 = smul.addr %s383, 8
        %s385 = scalar_lea.vmem %s5, %s384
        %p387 = scmp.eq.s32.totalorder %s22, 0
        // Predicated region
        $region101: #{conv_dv_wh_forward.1} parent=91 // pred_check
          %p388 = pneg %p387
        $region102: #{conv_dv_wh_forward.1} parent=91 // pred_check_branch
          %390 = sbr.rel (%p388) target = $region104
        $region103: #{conv_dv_wh_forward.1} parent=91 // pred_region
          %vm391 = vcmask 15360
          %392 = vst.msk [vmem:[%s385] sm:$0xff] %vm391, 0.0
        $region104: #{conv_dv_wh_forward.1} parent=91 // pred_fallthru
          _
        %v393 = vld [vmem:[%s318] sm:$0xff]
        %v394 = vld [vmem:[%s318 + $0x8] sm:$0xff]
        %v395 = vld [vmem:[%s318 + $0x10] sm:$0xff]
        %v396 = vld [vmem:[%s318 + $0x18] sm:$0xff]
        %v397 = vld [vmem:[%s318 + $0x20] sm:$0xff]
        %v398 = vld [vmem:[%s318 + $0x28] sm:$0xff]
        %v399 = vld [vmem:[%s325] sm:$0xf]
        %v400 = vld [vmem:[%s325 + $0x4] sm:$0xf]
        %v407 = vunpack.c.l.b16 %v393
        %v408 = vunpack.c.h.b16 %v393
        %v409 = vunpack.c.l.b16 %v394
        %v410 = vunpack.c.h.b16 %v394
        %v411 = vunpack.c.l.b16 %v395
        %v412 = vunpack.c.h.b16 %v395
        %v413 = vunpack.c.l.b16 %v396
        %v414 = vunpack.c.h.b16 %v396
        %v415 = vunpack.c.l.b16 %v397
        %v416 = vunpack.c.h.b16 %v397
        %v417 = vunpack.c.l.b16 %v398
        %v418 = vunpack.c.h.b16 %v398
        %v419 = vpack.c.b16 %v413, %v407
        %v420 = vpack.c.b16 %v414, %v408
        %v421 = vpack.c.b16 %v415, %v409
        %v422 = vpack.c.b16 %v416, %v410
        %v423 = vpack.c.b16 %v417, %v411
        %v424 = vpack.c.b16 %v418, %v412
        %v433 = vunpack.c.l.b16 %v399
        %v434 = vunpack.c.l.b16 %v400
        %v435 = vpack.c.b16 %v434, %v433
        %v436 = vld [vmem:[%s0] sm:$0xf]
        %s437 = scalar_lea.vmem %s0, 4
        %v438 = vld [vmem:[%s437] sm:$0xf]
        %439 = vrot.lane.b32.xlu0 %v419, 127
        %v440 = vpop.permute.xlu0 %439
        %441 = vrot.lane.b32.xlu0 %v420, 127
        %v442 = vpop.permute.xlu0 %441
        %443 = vrot.lane.b32.xlu0 %v421, 127
        %v444 = vpop.permute.xlu0 %443
        %445 = vrot.lane.b32.xlu0 %v422, 127
        %v446 = vpop.permute.xlu0 %445
        %447 = vrot.lane.b32.xlu0 %v423, 127
        %v448 = vpop.permute.xlu0 %447
        %449 = vrot.lane.b32.xlu0 %v424, 127
        %v450 = vpop.permute.xlu0 %449
        %451 = vrot.lane.b32.xlu0 %v435, 127
        %v452 = vpop.permute.xlu0 %451
        %vm453 = vcmask 1039360
        %v454 = vsel %vm453, %v440, %v442
        %v455 = vsel %vm453, %v442, %v444
        %v456 = vsel %vm453, %v444, %v446
        %v457 = vsel %vm453, %v446, %v448
        %v458 = vsel %vm453, %v448, %v450
        %v459 = vsel %vm453, %v450, %v452
        %vm466 = vcmask 130048
        %v468 = vsel %vm466, %v438, 0
        %470 = vmatprep.subr.bf16.mxu0 0
        %471 = vmatpush1.bf16.msra.mxu0 0
        %472 = vmatprep.subr.bf16.mxu0 0
        %473 = vmatpush1.bf16.msra.mxu0 0
        %474 = vmatprep.subr.bf16.mxu0 0
        %475 = vmatpush1.bf16.msra.mxu0 0
        %476 = vmatprep.subr.bf16.mxu0 0
        %477 = vmatpush1.bf16.msra.mxu0 0
        %478 = vmatprep.subr.bf16.mxu0 0
        %479 = vmatpush1.bf16.msra.mxu0 0
        %480 = vmatprep.subr.bf16.mxu0 0
        %481 = vmatpush1.bf16.msra.mxu0 0
        %482 = vmatprep.subr.bf16.mxu0 0
        %483 = vmatpush1.bf16.msra.mxu0 0
        %484 = vmatprep.subr.bf16.mxu0 %v455
        %485 = vmatpush1.bf16.msra.mxu0 %v454
        %486 = vmatprep.subr.bf16.mxu0 0
        %487 = vmatpush2.bf16.msra.mxu0 0
        %488 = vmatprep.subr.bf16.mxu0 0
        %489 = vmatpush2.bf16.msra.mxu0 0
        %490 = vmatprep.subr.bf16.mxu0 0
        %491 = vmatpush2.bf16.msra.mxu0 0
        %492 = vmatprep.subr.bf16.mxu0 0
        %493 = vmatpush2.bf16.msra.mxu0 0
        %494 = vmatprep.subr.bf16.mxu0 0
        %495 = vmatpush2.bf16.msra.mxu0 0
        %496 = vmatprep.subr.bf16.mxu0 0
        %497 = vmatpush2.bf16.msra.mxu0 0
        %498 = vmatprep.subr.bf16.mxu0 0
        %499 = vmatpush2.bf16.msra.mxu0 0
        %500 = vmatprep.subr.bf16.mxu0 0
        %501 = vmatpush2.bf16.msra.mxu0 0
        %502 = vmatprep.mubr.bf16.mxu0 0
        %503 = vmatmul.mubr.bf16.gmra.mxu0 %v468
        %v504 = vpop.f32.mrf.mxu0
        %v505 = vadd.f32 0.0, %v504
        %v506 = vpop.f32.mrf.mxu0
        %v507 = vadd.f32 0.0, %v506
        %v508 = vpop.f32.mrf.mxu0
        %v509 = vpop.f32.mrf.mxu0
        %510 = vdwg.mxu0
        %511 = vmatprep.subr.bf16.mxu0 0
        %512 = vmatpush1.bf16.msra.mxu0 0
        %513 = vmatprep.subr.bf16.mxu0 0
        %514 = vmatpush1.bf16.msra.mxu0 0
        %515 = vmatprep.subr.bf16.mxu0 0
        %516 = vmatpush1.bf16.msra.mxu0 0
        %517 = vmatprep.subr.bf16.mxu0 0
        %518 = vmatpush1.bf16.msra.mxu0 0
        %519 = vmatprep.subr.bf16.mxu0 0
        %520 = vmatpush1.bf16.msra.mxu0 0
        %521 = vmatprep.subr.bf16.mxu0 0
        %522 = vmatpush1.bf16.msra.mxu0 0
        %523 = vmatprep.subr.bf16.mxu0 0
        %524 = vmatpush1.bf16.msra.mxu0 0
        %525 = vmatprep.subr.bf16.mxu0 %v457
        %526 = vmatpush1.bf16.msra.mxu0 %v456
        %527 = vmatprep.subr.bf16.mxu0 0
        %528 = vmatpush2.bf16.msra.mxu0 0
        %529 = vmatprep.subr.bf16.mxu0 0
        %530 = vmatpush2.bf16.msra.mxu0 0
        %531 = vmatprep.subr.bf16.mxu0 0
        %532 = vmatpush2.bf16.msra.mxu0 0
        %533 = vmatprep.subr.bf16.mxu0 0
        %534 = vmatpush2.bf16.msra.mxu0 0
        %535 = vmatprep.subr.bf16.mxu0 0
        %536 = vmatpush2.bf16.msra.mxu0 0
        %537 = vmatprep.subr.bf16.mxu0 0
        %538 = vmatpush2.bf16.msra.mxu0 0
        %539 = vmatprep.subr.bf16.mxu0 0
        %540 = vmatpush2.bf16.msra.mxu0 0
        %541 = vmatprep.subr.bf16.mxu0 0
        %542 = vmatpush2.bf16.msra.mxu0 0
        %543 = vmatprep.mubr.bf16.mxu0 0
        %544 = vmatmul.mubr.bf16.gmra.mxu0 %v468
        %v545 = vpop.f32.mrf.mxu0
        %v546 = vadd.f32 0.0, %v545
        %v547 = vpop.f32.mrf.mxu0
        %v548 = vadd.f32 0.0, %v547
        %v549 = vpop.f32.mrf.mxu0
        %v550 = vpop.f32.mrf.mxu0
        %551 = vdwg.mxu0
        %552 = vmatprep.subr.bf16.mxu0 0
        %553 = vmatpush1.bf16.msra.mxu0 0
        %554 = vmatprep.subr.bf16.mxu0 0
        %555 = vmatpush1.bf16.msra.mxu0 0
        %556 = vmatprep.subr.bf16.mxu0 0
        %557 = vmatpush1.bf16.msra.mxu0 0
        %558 = vmatprep.subr.bf16.mxu0 0
        %559 = vmatpush1.bf16.msra.mxu0 0
        %560 = vmatprep.subr.bf16.mxu0 0
        %561 = vmatpush1.bf16.msra.mxu0 0
        %562 = vmatprep.subr.bf16.mxu0 0
        %563 = vmatpush1.bf16.msra.mxu0 0
        %564 = vmatprep.subr.bf16.mxu0 0
        %565 = vmatpush1.bf16.msra.mxu0 0
        %566 = vmatprep.subr.bf16.mxu0 %v459
        %567 = vmatpush1.bf16.msra.mxu0 %v458
        %568 = vmatprep.subr.bf16.mxu0 0
        %569 = vmatpush2.bf16.msra.mxu0 0
        %570 = vmatprep.subr.bf16.mxu0 0
        %571 = vmatpush2.bf16.msra.mxu0 0
        %572 = vmatprep.subr.bf16.mxu0 0
        %573 = vmatpush2.bf16.msra.mxu0 0
        %574 = vmatprep.subr.bf16.mxu0 0
        %575 = vmatpush2.bf16.msra.mxu0 0
        %576 = vmatprep.subr.bf16.mxu0 0
        %577 = vmatpush2.bf16.msra.mxu0 0
        %578 = vmatprep.subr.bf16.mxu0 0
        %579 = vmatpush2.bf16.msra.mxu0 0
        %580 = vmatprep.subr.bf16.mxu0 0
        %581 = vmatpush2.bf16.msra.mxu0 0
        %582 = vmatprep.subr.bf16.mxu0 0
        %583 = vmatpush2.bf16.msra.mxu0 0
        %584 = vmatprep.mubr.bf16.mxu0 0
        %585 = vmatmul.mubr.bf16.gmra.mxu0 %v468
        %v586 = vpop.f32.mrf.mxu0
        %v587 = vadd.f32 0.0, %v586
        %v588 = vpop.f32.mrf.mxu0
        %v589 = vadd.f32 0.0, %v588
        %v590 = vpop.f32.mrf.mxu0
        %v591 = vpop.f32.mrf.mxu0
        %592 = vdwg.mxu0
        %v594 = vsel %vm466, %v436, 0
        %596 = vmatprep.subr.bf16.mxu0 0
        %597 = vmatpush1.bf16.msra.mxu0 0
        %598 = vmatprep.subr.bf16.mxu0 0
        %599 = vmatpush1.bf16.msra.mxu0 0
        %600 = vmatprep.subr.bf16.mxu0 0
        %601 = vmatpush1.bf16.msra.mxu0 0
        %602 = vmatprep.subr.bf16.mxu0 0
        %603 = vmatpush1.bf16.msra.mxu0 0
        %604 = vmatprep.subr.bf16.mxu0 0
        %605 = vmatpush1.bf16.msra.mxu0 0
        %606 = vmatprep.subr.bf16.mxu0 0
        %607 = vmatpush1.bf16.msra.mxu0 0
        %608 = vmatprep.subr.bf16.mxu0 0
        %609 = vmatpush1.bf16.msra.mxu0 0
        %610 = vmatprep.subr.bf16.mxu0 %v420
        %611 = vmatpush1.bf16.msra.mxu0 %v419
        %612 = vmatprep.subr.bf16.mxu0 0
        %613 = vmatpush2.bf16.msra.mxu0 0
        %614 = vmatprep.subr.bf16.mxu0 0
        %615 = vmatpush2.bf16.msra.mxu0 0
        %616 = vmatprep.subr.bf16.mxu0 0
        %617 = vmatpush2.bf16.msra.mxu0 0
        %618 = vmatprep.subr.bf16.mxu0 0
        %619 = vmatpush2.bf16.msra.mxu0 0
        %620 = vmatprep.subr.bf16.mxu0 0
        %621 = vmatpush2.bf16.msra.mxu0 0
        %622 = vmatprep.subr.bf16.mxu0 0
        %623 = vmatpush2.bf16.msra.mxu0 0
        %624 = vmatprep.subr.bf16.mxu0 0
        %625 = vmatpush2.bf16.msra.mxu0 0
        %626 = vmatprep.subr.bf16.mxu0 0
        %627 = vmatpush2.bf16.msra.mxu0 0
        %628 = vmatprep.mubr.bf16.mxu0 0
        %629 = vmatmul.mubr.bf16.gmra.mxu0 %v594
        %v630 = vpop.f32.mrf.mxu0
        %v631 = vadd.f32 %v505, %v630
        %v632 = vpop.f32.mrf.mxu0
        %v633 = vadd.f32 %v507, %v632
        %v634 = vpop.f32.mrf.mxu0
        %v635 = vpop.f32.mrf.mxu0
        %636 = vdwg.mxu0
        %637 = vmatprep.subr.bf16.mxu0 0
        %638 = vmatpush1.bf16.msra.mxu0 0
        %639 = vmatprep.subr.bf16.mxu0 0
        %640 = vmatpush1.bf16.msra.mxu0 0
        %641 = vmatprep.subr.bf16.mxu0 0
        %642 = vmatpush1.bf16.msra.mxu0 0
        %643 = vmatprep.subr.bf16.mxu0 0
        %644 = vmatpush1.bf16.msra.mxu0 0
        %645 = vmatprep.subr.bf16.mxu0 0
        %646 = vmatpush1.bf16.msra.mxu0 0
        %647 = vmatprep.subr.bf16.mxu0 0
        %648 = vmatpush1.bf16.msra.mxu0 0
        %649 = vmatprep.subr.bf16.mxu0 0
        %650 = vmatpush1.bf16.msra.mxu0 0
        %651 = vmatprep.subr.bf16.mxu0 %v422
        %652 = vmatpush1.bf16.msra.mxu0 %v421
        %653 = vmatprep.subr.bf16.mxu0 0
        %654 = vmatpush2.bf16.msra.mxu0 0
        %655 = vmatprep.subr.bf16.mxu0 0
        %656 = vmatpush2.bf16.msra.mxu0 0
        %657 = vmatprep.subr.bf16.mxu0 0
        %658 = vmatpush2.bf16.msra.mxu0 0
        %659 = vmatprep.subr.bf16.mxu0 0
        %660 = vmatpush2.bf16.msra.mxu0 0
        %661 = vmatprep.subr.bf16.mxu0 0
        %662 = vmatpush2.bf16.msra.mxu0 0
        %663 = vmatprep.subr.bf16.mxu0 0
        %664 = vmatpush2.bf16.msra.mxu0 0
        %665 = vmatprep.subr.bf16.mxu0 0
        %666 = vmatpush2.bf16.msra.mxu0 0
        %667 = vmatprep.subr.bf16.mxu0 0
        %668 = vmatpush2.bf16.msra.mxu0 0
        %669 = vmatprep.mubr.bf16.mxu0 0
        %670 = vmatmul.mubr.bf16.gmra.mxu0 %v594
        %v671 = vpop.f32.mrf.mxu0
        %v672 = vadd.f32 %v546, %v671
        %v673 = vpop.f32.mrf.mxu0
        %v674 = vadd.f32 %v548, %v673
        %v675 = vpop.f32.mrf.mxu0
        %v676 = vpop.f32.mrf.mxu0
        %677 = vdwg.mxu0
        %678 = vmatprep.subr.bf16.mxu0 0
        %679 = vmatpush1.bf16.msra.mxu0 0
        %680 = vmatprep.subr.bf16.mxu0 0
        %681 = vmatpush1.bf16.msra.mxu0 0
        %682 = vmatprep.subr.bf16.mxu0 0
        %683 = vmatpush1.bf16.msra.mxu0 0
        %684 = vmatprep.subr.bf16.mxu0 0
        %685 = vmatpush1.bf16.msra.mxu0 0
        %686 = vmatprep.subr.bf16.mxu0 0
        %687 = vmatpush1.bf16.msra.mxu0 0
        %688 = vmatprep.subr.bf16.mxu0 0
        %689 = vmatpush1.bf16.msra.mxu0 0
        %690 = vmatprep.subr.bf16.mxu0 0
        %691 = vmatpush1.bf16.msra.mxu0 0
        %692 = vmatprep.subr.bf16.mxu0 %v424
        %693 = vmatpush1.bf16.msra.mxu0 %v423
        %694 = vmatprep.subr.bf16.mxu0 0
        %695 = vmatpush2.bf16.msra.mxu0 0
        %696 = vmatprep.subr.bf16.mxu0 0
        %697 = vmatpush2.bf16.msra.mxu0 0
        %698 = vmatprep.subr.bf16.mxu0 0
        %699 = vmatpush2.bf16.msra.mxu0 0
        %700 = vmatprep.subr.bf16.mxu0 0
        %701 = vmatpush2.bf16.msra.mxu0 0
        %702 = vmatprep.subr.bf16.mxu0 0
        %703 = vmatpush2.bf16.msra.mxu0 0
        %704 = vmatprep.subr.bf16.mxu0 0
        %705 = vmatpush2.bf16.msra.mxu0 0
        %706 = vmatprep.subr.bf16.mxu0 0
        %707 = vmatpush2.bf16.msra.mxu0 0
        %708 = vmatprep.subr.bf16.mxu0 0
        %709 = vmatpush2.bf16.msra.mxu0 0
        %710 = vmatprep.mubr.bf16.mxu0 0
        %711 = vmatmul.mubr.bf16.gmra.mxu0 %v594
        %v712 = vpop.f32.mrf.mxu0
        %v713 = vadd.f32 %v587, %v712
        %v714 = vpop.f32.mrf.mxu0
        %v715 = vadd.f32 %v589, %v714
        %v716 = vpop.f32.mrf.mxu0
        %v717 = vpop.f32.mrf.mxu0
        %718 = vdwg.mxu0
        %s719 = scalar_lea.vmem %s0, 8
        %v720 = vld [vmem:[%s719] sm:$0xf]
        %721 = vrot.lane.b32.xlu0 %v419, 119
        %v722 = vpop.permute.xlu0 %721
        %723 = vrot.lane.b32.xlu0 %v420, 119
        %v724 = vpop.permute.xlu0 %723
        %725 = vrot.lane.b32.xlu0 %v421, 119
        %v726 = vpop.permute.xlu0 %725
        %727 = vrot.lane.b32.xlu0 %v422, 119
        %v728 = vpop.permute.xlu0 %727
        %729 = vrot.lane.b32.xlu0 %v423, 119
        %v730 = vpop.permute.xlu0 %729
        %731 = vrot.lane.b32.xlu0 %v424, 119
        %v732 = vpop.permute.xlu0 %731
        %733 = vrot.lane.b32.xlu0 %v435, 119
        %v734 = vpop.permute.xlu0 %733
        %vm735 = vcmask 973824
        %v736 = vsel %vm735, %v722, %v724
        %v737 = vsel %vm735, %v724, %v726
        %v738 = vsel %vm735, %v726, %v728
        %v739 = vsel %vm735, %v728, %v730
        %v740 = vsel %vm735, %v730, %v732
        %v741 = vsel %vm735, %v732, %v734
        %v749 = vsel %vm466, %v720, 0
        %751 = vmatprep.subr.bf16.mxu0 0
        %752 = vmatpush1.bf16.msra.mxu0 0
        %753 = vmatprep.subr.bf16.mxu0 0
        %754 = vmatpush1.bf16.msra.mxu0 0
        %755 = vmatprep.subr.bf16.mxu0 0
        %756 = vmatpush1.bf16.msra.mxu0 0
        %757 = vmatprep.subr.bf16.mxu0 0
        %758 = vmatpush1.bf16.msra.mxu0 0
        %759 = vmatprep.subr.bf16.mxu0 0
        %760 = vmatpush1.bf16.msra.mxu0 0
        %761 = vmatprep.subr.bf16.mxu0 0
        %762 = vmatpush1.bf16.msra.mxu0 0
        %763 = vmatprep.subr.bf16.mxu0 0
        %764 = vmatpush1.bf16.msra.mxu0 0
        %765 = vmatprep.subr.bf16.mxu0 %v737
        %766 = vmatpush1.bf16.msra.mxu0 %v736
        %767 = vmatprep.subr.bf16.mxu0 0
        %768 = vmatpush2.bf16.msra.mxu0 0
        %769 = vmatprep.subr.bf16.mxu0 0
        %770 = vmatpush2.bf16.msra.mxu0 0
        %771 = vmatprep.subr.bf16.mxu0 0
        %772 = vmatpush2.bf16.msra.mxu0 0
        %773 = vmatprep.subr.bf16.mxu0 0
        %774 = vmatpush2.bf16.msra.mxu0 0
        %775 = vmatprep.subr.bf16.mxu0 0
        %776 = vmatpush2.bf16.msra.mxu0 0
        %777 = vmatprep.subr.bf16.mxu0 0
        %778 = vmatpush2.bf16.msra.mxu0 0
        %779 = vmatprep.subr.bf16.mxu0 0
        %780 = vmatpush2.bf16.msra.mxu0 0
        %781 = vmatprep.subr.bf16.mxu0 0
        %782 = vmatpush2.bf16.msra.mxu0 0
        %783 = vmatprep.mubr.bf16.mxu0 0
        %784 = vmatmul.mubr.bf16.gmra.mxu0 %v749
        %v785 = vpop.f32.mrf.mxu0
        %v786 = vadd.f32 0.0, %v785
        %v787 = vpop.f32.mrf.mxu0
        %v788 = vadd.f32 0.0, %v787
        %v789 = vpop.f32.mrf.mxu0
        %v790 = vpop.f32.mrf.mxu0
        %791 = vdwg.mxu0
        %792 = vmatprep.subr.bf16.mxu0 0
        %793 = vmatpush1.bf16.msra.mxu0 0
        %794 = vmatprep.subr.bf16.mxu0 0
        %795 = vmatpush1.bf16.msra.mxu0 0
        %796 = vmatprep.subr.bf16.mxu0 0
        %797 = vmatpush1.bf16.msra.mxu0 0
        %798 = vmatprep.subr.bf16.mxu0 0
        %799 = vmatpush1.bf16.msra.mxu0 0
        %800 = vmatprep.subr.bf16.mxu0 0
        %801 = vmatpush1.bf16.msra.mxu0 0
        %802 = vmatprep.subr.bf16.mxu0 0
        %803 = vmatpush1.bf16.msra.mxu0 0
        %804 = vmatprep.subr.bf16.mxu0 0
        %805 = vmatpush1.bf16.msra.mxu0 0
        %806 = vmatprep.subr.bf16.mxu0 %v739
        %807 = vmatpush1.bf16.msra.mxu0 %v738
        %808 = vmatprep.subr.bf16.mxu0 0
        %809 = vmatpush2.bf16.msra.mxu0 0
        %810 = vmatprep.subr.bf16.mxu0 0
        %811 = vmatpush2.bf16.msra.mxu0 0
        %812 = vmatprep.subr.bf16.mxu0 0
        %813 = vmatpush2.bf16.msra.mxu0 0
        %814 = vmatprep.subr.bf16.mxu0 0
        %815 = vmatpush2.bf16.msra.mxu0 0
        %816 = vmatprep.subr.bf16.mxu0 0
        %817 = vmatpush2.bf16.msra.mxu0 0
        %818 = vmatprep.subr.bf16.mxu0 0
        %819 = vmatpush2.bf16.msra.mxu0 0
        %820 = vmatprep.subr.bf16.mxu0 0
        %821 = vmatpush2.bf16.msra.mxu0 0
        %822 = vmatprep.subr.bf16.mxu0 0
        %823 = vmatpush2.bf16.msra.mxu0 0
        %824 = vmatprep.mubr.bf16.mxu0 0
        %825 = vmatmul.mubr.bf16.gmra.mxu0 %v749
        %v826 = vpop.f32.mrf.mxu0
        %v827 = vadd.f32 0.0, %v826
        %v828 = vpop.f32.mrf.mxu0
        %v829 = vadd.f32 0.0, %v828
        %v830 = vpop.f32.mrf.mxu0
        %v831 = vpop.f32.mrf.mxu0
        %832 = vdwg.mxu0
        %833 = vmatprep.subr.bf16.mxu0 0
        %834 = vmatpush1.bf16.msra.mxu0 0
        %835 = vmatprep.subr.bf16.mxu0 0
        %836 = vmatpush1.bf16.msra.mxu0 0
        %837 = vmatprep.subr.bf16.mxu0 0
        %838 = vmatpush1.bf16.msra.mxu0 0
        %839 = vmatprep.subr.bf16.mxu0 0
        %840 = vmatpush1.bf16.msra.mxu0 0
        %841 = vmatprep.subr.bf16.mxu0 0
        %842 = vmatpush1.bf16.msra.mxu0 0
        %843 = vmatprep.subr.bf16.mxu0 0
        %844 = vmatpush1.bf16.msra.mxu0 0
        %845 = vmatprep.subr.bf16.mxu0 0
        %846 = vmatpush1.bf16.msra.mxu0 0
        %847 = vmatprep.subr.bf16.mxu0 %v741
        %848 = vmatpush1.bf16.msra.mxu0 %v740
        %849 = vmatprep.subr.bf16.mxu0 0
        %850 = vmatpush2.bf16.msra.mxu0 0
        %851 = vmatprep.subr.bf16.mxu0 0
        %852 = vmatpush2.bf16.msra.mxu0 0
        %853 = vmatprep.subr.bf16.mxu0 0
        %854 = vmatpush2.bf16.msra.mxu0 0
        %855 = vmatprep.subr.bf16.mxu0 0
        %856 = vmatpush2.bf16.msra.mxu0 0
        %857 = vmatprep.subr.bf16.mxu0 0
        %858 = vmatpush2.bf16.msra.mxu0 0
        %859 = vmatprep.subr.bf16.mxu0 0
        %860 = vmatpush2.bf16.msra.mxu0 0
        %861 = vmatprep.subr.bf16.mxu0 0
        %862 = vmatpush2.bf16.msra.mxu0 0
        %863 = vmatprep.subr.bf16.mxu0 0
        %864 = vmatpush2.bf16.msra.mxu0 0
        %865 = vmatprep.mubr.bf16.mxu0 0
        %866 = vmatmul.mubr.bf16.gmra.mxu0 %v749
        %v867 = vpop.f32.mrf.mxu0
        %v868 = vadd.f32 0.0, %v867
        %v869 = vpop.f32.mrf.mxu0
        %v870 = vadd.f32 0.0, %v869
        %v871 = vpop.f32.mrf.mxu0
        %v872 = vpop.f32.mrf.mxu0
        %873 = vdwg.mxu0
        %v874 = vadd.f32 %v631, %v786
        %v875 = vadd.f32 %v633, %v788
        %v876 = vadd.f32 %v672, %v827
        %v877 = vadd.f32 %v674, %v829
        %v878 = vadd.f32 %v713, %v868
        %v879 = vadd.f32 %v715, %v870
        %s880 = scalar_lea.vmem %s0, 12
        %v881 = vld [vmem:[%s880] sm:$0xf]
        %882 = vrot.lane.b32.xlu0 %v419, 118
        %v883 = vpop.permute.xlu0 %882
        %884 = vrot.lane.b32.xlu0 %v420, 118
        %v885 = vpop.permute.xlu0 %884
        %886 = vrot.lane.b32.xlu0 %v421, 118
        %v887 = vpop.permute.xlu0 %886
        %888 = vrot.lane.b32.xlu0 %v422, 118
        %v889 = vpop.permute.xlu0 %888
        %890 = vrot.lane.b32.xlu0 %v423, 118
        %v891 = vpop.permute.xlu0 %890
        %892 = vrot.lane.b32.xlu0 %v424, 118
        %v893 = vpop.permute.xlu0 %892
        %894 = vrot.lane.b32.xlu0 %v435, 118
        %v895 = vpop.permute.xlu0 %894
        %vm896 = vcmask 965632
        %v897 = vsel %vm896, %v883, %v885
        %v898 = vsel %vm896, %v885, %v887
        %v899 = vsel %vm896, %v887, %v889
        %v900 = vsel %vm896, %v889, %v891
        %v901 = vsel %vm896, %v891, %v893
        %v902 = vsel %vm896, %v893, %v895
        %v910 = vsel %vm466, %v881, 0
        %912 = vmatprep.subr.bf16.mxu0 0
        %913 = vmatpush1.bf16.msra.mxu0 0
        %914 = vmatprep.subr.bf16.mxu0 0
        %915 = vmatpush1.bf16.msra.mxu0 0
        %916 = vmatprep.subr.bf16.mxu0 0
        %917 = vmatpush1.bf16.msra.mxu0 0
        %918 = vmatprep.subr.bf16.mxu0 0
        %919 = vmatpush1.bf16.msra.mxu0 0
        %920 = vmatprep.subr.bf16.mxu0 0
        %921 = vmatpush1.bf16.msra.mxu0 0
        %922 = vmatprep.subr.bf16.mxu0 0
        %923 = vmatpush1.bf16.msra.mxu0 0
        %924 = vmatprep.subr.bf16.mxu0 0
        %925 = vmatpush1.bf16.msra.mxu0 0
        %926 = vmatprep.subr.bf16.mxu0 %v898
        %927 = vmatpush1.bf16.msra.mxu0 %v897
        %928 = vmatprep.subr.bf16.mxu0 0
        %929 = vmatpush2.bf16.msra.mxu0 0
        %930 = vmatprep.subr.bf16.mxu0 0
        %931 = vmatpush2.bf16.msra.mxu0 0
        %932 = vmatprep.subr.bf16.mxu0 0
        %933 = vmatpush2.bf16.msra.mxu0 0
        %934 = vmatprep.subr.bf16.mxu0 0
        %935 = vmatpush2.bf16.msra.mxu0 0
        %936 = vmatprep.subr.bf16.mxu0 0
        %937 = vmatpush2.bf16.msra.mxu0 0
        %938 = vmatprep.subr.bf16.mxu0 0
        %939 = vmatpush2.bf16.msra.mxu0 0
        %940 = vmatprep.subr.bf16.mxu0 0
        %941 = vmatpush2.bf16.msra.mxu0 0
        %942 = vmatprep.subr.bf16.mxu0 0
        %943 = vmatpush2.bf16.msra.mxu0 0
        %944 = vmatprep.mubr.bf16.mxu0 0
        %945 = vmatmul.mubr.bf16.gmra.mxu0 %v910
        %v946 = vpop.f32.mrf.mxu0
        %v947 = vadd.f32 0.0, %v946
        %v948 = vpop.f32.mrf.mxu0
        %v949 = vadd.f32 0.0, %v948
        %v950 = vpop.f32.mrf.mxu0
        %v951 = vpop.f32.mrf.mxu0
        %952 = vdwg.mxu0
        %953 = vmatprep.subr.bf16.mxu0 0
        %954 = vmatpush1.bf16.msra.mxu0 0
        %955 = vmatprep.subr.bf16.mxu0 0
        %956 = vmatpush1.bf16.msra.mxu0 0
        %957 = vmatprep.subr.bf16.mxu0 0
        %958 = vmatpush1.bf16.msra.mxu0 0
        %959 = vmatprep.subr.bf16.mxu0 0
        %960 = vmatpush1.bf16.msra.mxu0 0
        %961 = vmatprep.subr.bf16.mxu0 0
        %962 = vmatpush1.bf16.msra.mxu0 0
        %963 = vmatprep.subr.bf16.mxu0 0
        %964 = vmatpush1.bf16.msra.mxu0 0
        %965 = vmatprep.subr.bf16.mxu0 0
        %966 = vmatpush1.bf16.msra.mxu0 0
        %967 = vmatprep.subr.bf16.mxu0 %v900
        %968 = vmatpush1.bf16.msra.mxu0 %v899
        %969 = vmatprep.subr.bf16.mxu0 0
        %970 = vmatpush2.bf16.msra.mxu0 0
        %971 = vmatprep.subr.bf16.mxu0 0
        %972 = vmatpush2.bf16.msra.mxu0 0
        %973 = vmatprep.subr.bf16.mxu0 0
        %974 = vmatpush2.bf16.msra.mxu0 0
        %975 = vmatprep.subr.bf16.mxu0 0
        %976 = vmatpush2.bf16.msra.mxu0 0
        %977 = vmatprep.subr.bf16.mxu0 0
        %978 = vmatpush2.bf16.msra.mxu0 0
        %979 = vmatprep.subr.bf16.mxu0 0
        %980 = vmatpush2.bf16.msra.mxu0 0
        %981 = vmatprep.subr.bf16.mxu0 0
        %982 = vmatpush2.bf16.msra.mxu0 0
        %983 = vmatprep.subr.bf16.mxu0 0
        %984 = vmatpush2.bf16.msra.mxu0 0
        %985 = vmatprep.mubr.bf16.mxu0 0
        %986 = vmatmul.mubr.bf16.gmra.mxu0 %v910
        %v987 = vpop.f32.mrf.mxu0
        %v988 = vadd.f32 0.0, %v987
        %v989 = vpop.f32.mrf.mxu0
        %v990 = vadd.f32 0.0, %v989
        %v991 = vpop.f32.mrf.mxu0
        %v992 = vpop.f32.mrf.mxu0
        %993 = vdwg.mxu0
        %994 = vmatprep.subr.bf16.mxu0 0
        %995 = vmatpush1.bf16.msra.mxu0 0
        %996 = vmatprep.subr.bf16.mxu0 0
        %997 = vmatpush1.bf16.msra.mxu0 0
        %998 = vmatprep.subr.bf16.mxu0 0
        %999 = vmatpush1.bf16.msra.mxu0 0
        %1000 = vmatprep.subr.bf16.mxu0 0
        %1001 = vmatpush1.bf16.msra.mxu0 0
        %1002 = vmatprep.subr.bf16.mxu0 0
        %1003 = vmatpush1.bf16.msra.mxu0 0
        %1004 = vmatprep.subr.bf16.mxu0 0
        %1005 = vmatpush1.bf16.msra.mxu0 0
        %1006 = vmatprep.subr.bf16.mxu0 0
        %1007 = vmatpush1.bf16.msra.mxu0 0
        %1008 = vmatprep.subr.bf16.mxu0 %v902
        %1009 = vmatpush1.bf16.msra.mxu0 %v901
        %1010 = vmatprep.subr.bf16.mxu0 0
        %1011 = vmatpush2.bf16.msra.mxu0 0
        %1012 = vmatprep.subr.bf16.mxu0 0
        %1013 = vmatpush2.bf16.msra.mxu0 0
        %1014 = vmatprep.subr.bf16.mxu0 0
        %1015 = vmatpush2.bf16.msra.mxu0 0
        %1016 = vmatprep.subr.bf16.mxu0 0
        %1017 = vmatpush2.bf16.msra.mxu0 0
        %1018 = vmatprep.subr.bf16.mxu0 0
        %1019 = vmatpush2.bf16.msra.mxu0 0
        %1020 = vmatprep.subr.bf16.mxu0 0
        %1021 = vmatpush2.bf16.msra.mxu0 0
        %1022 = vmatprep.subr.bf16.mxu0 0
        %1023 = vmatpush2.bf16.msra.mxu0 0
        %1024 = vmatprep.subr.bf16.mxu0 0
        %1025 = vmatpush2.bf16.msra.mxu0 0
        %1026 = vmatprep.mubr.bf16.mxu0 0
        %1027 = vmatmul.mubr.bf16.gmra.mxu0 %v910
        %v1028 = vpop.f32.mrf.mxu0
        %v1029 = vadd.f32 0.0, %v1028
        %v1030 = vpop.f32.mrf.mxu0
        %v1031 = vadd.f32 0.0, %v1030
        %v1032 = vpop.f32.mrf.mxu0
        %v1033 = vpop.f32.mrf.mxu0
        %1034 = vdwg.mxu0
        %v1035 = vadd.f32 %v874, %v947
        %v1036 = vadd.f32 %v875, %v949
        %v1037 = vadd.f32 %v876, %v988
        %v1038 = vadd.f32 %v877, %v990
        %v1039 = vadd.f32 %v878, %v1029
        %v1040 = vadd.f32 %v879, %v1031
        %v1041 = vpack.c.bf16 %v1035, %v1035
        %v1042 = vpack.c.bf16 %v1036, %v1036
        %v1043 = vpack.c.bf16 %v1037, %v1037
        %v1044 = vpack.c.bf16 %v1038, %v1038
        %v1045 = vpack.c.bf16 %v1039, %v1039
        %v1046 = vpack.c.bf16 %v1040, %v1040
        %v1053 = vunpack.c.l.b16 %v1041
        %v1054 = vunpack.c.l.b16 %v1042
        %v1055 = vunpack.c.l.b16 %v1043
        %v1056 = vunpack.c.l.b16 %v1044
        %v1057 = vunpack.c.l.b16 %v1045
        %v1058 = vunpack.c.l.b16 %v1046
        %v1059 = vpack.c.b16 %v1054, %v1053
        %v1060 = vpack.c.b16 %v1056, %v1055
        %v1061 = vpack.c.b16 %v1058, %v1057
        %1065 = vst [vmem:[%s379] sm:$0xff] %v1059
        %1066 = vst [vmem:[%s379 + $0x8] sm:$0xff] %v1060
        %1067 = vst [vmem:[%s379 + $0x10] sm:$0xff] %v1061
        %v1068 = vld [vmem:[%s371] sm:$0x3f]
        %v1069 = vunpack.c.l.bf16 %v1068
        %v1070 = vunpack.c.h.bf16 %v1068
        %v1073 = vlaneseq
        %v1074 = vshrl.u32 %v1073, 7
        %v1075 = vsub.s32 0, %v1074
        %v1076 = vrot.slane %v1069, %v1075
        %v1077 = vlaneseq
        %v1078 = vshrl.u32 %v1077, 7
        %v1079 = vsub.s32 2, %v1078
        %v1080 = vrot.slane %v1069, %v1079
        %v1081 = vlaneseq
        %v1082 = vshrl.u32 %v1081, 7
        %v1083 = vsub.s32 4, %v1082
        %v1084 = vrot.slane %v1069, %v1083
        %v1085 = vlaneseq
        %v1086 = vshrl.u32 %v1085, 7
        %v1087 = vsub.s32 6, %v1086
        %v1088 = vrot.slane %v1069, %v1087
        %v1089 = vlaneseq
        %v1090 = vshrl.u32 %v1089, 7
        %v1091 = vsub.s32 0, %v1090
        %v1092 = vrot.slane %v1070, %v1091
        %v1093 = vlaneseq
        %v1094 = vshrl.u32 %v1093, 7
        %v1095 = vsub.s32 2, %v1094
        %v1096 = vrot.slane %v1070, %v1095
        %v1103 = vlaneseq
        %v1104 = vshrl.u32 %v1103, 7
        %v1105 = vsub.s32 0, %v1104
        %v1106 = vrot.slane %v1076, %v1105
        %v1107 = vlaneseq
        %v1108 = vshrl.u32 %v1107, 7
        %v1109 = vsub.s32 0, %v1108
        %v1110 = vrot.slane %v1080, %v1109
        %v1111 = vlaneseq
        %v1112 = vshrl.u32 %v1111, 7
        %v1113 = vsub.s32 0, %v1112
        %v1114 = vrot.slane %v1084, %v1113
        %v1115 = vlaneseq
        %v1116 = vshrl.u32 %v1115, 7
        %v1117 = vsub.s32 0, %v1116
        %v1118 = vrot.slane %v1088, %v1117
        %v1119 = vlaneseq
        %v1120 = vshrl.u32 %v1119, 7
        %v1121 = vsub.s32 0, %v1120
        %v1122 = vrot.slane %v1092, %v1121
        %v1123 = vlaneseq
        %v1124 = vshrl.u32 %v1123, 7
        %v1125 = vsub.s32 0, %v1124
        %v1126 = vrot.slane %v1096, %v1125
        %v1127 = vmul.f32 %v1035, %v1106
        %v1128 = vmul.f32 %v1036, %v1110
        %v1129 = vmul.f32 %v1037, %v1114
        %v1130 = vmul.f32 %v1038, %v1118
        %v1131 = vmul.f32 %v1039, %v1122
        %v1132 = vmul.f32 %v1040, %v1126
        %v1133 = vld [vmem:[%s385] sm:$0xff]
        %v1134 = vadd.f32 %v1127, %v1128
        %v1135 = vadd.f32 %v1134, %v1129
        %v1136 = vadd.f32 %v1135, %v1130
        %v1137 = vadd.f32 %v1136, %v1131
        %v1138 = vadd.f32 %v1137, %v1132
        %1139 = vadd.xlane.f32.xlu0 %v1138
        %v1140 = vpop.xlane.xlu0 %1139
        %v1141 = vmul.f32 %v1127, %v1127
        %v1142 = vmul.f32 %v1128, %v1128
        %v1143 = vmul.f32 %v1129, %v1129
        %v1144 = vmul.f32 %v1130, %v1130
        %v1145 = vmul.f32 %v1131, %v1131
        %v1146 = vmul.f32 %v1132, %v1132
        %v1147 = vadd.f32 %v1141, %v1142
        %v1148 = vadd.f32 %v1147, %v1143
        %v1149 = vadd.f32 %v1148, %v1144
        %v1150 = vadd.f32 %v1149, %v1145
        %v1151 = vadd.f32 %v1150, %v1146
        %1152 = vadd.xlane.f32.xlu0 %v1151
        %v1153 = vpop.xlane.xlu0 %1152
        %vm1154 = vcmask 7168
        %v1155 = vsel %vm1154, %v1140, %v1153
        %v1156 = vadd.f32 %v1133, %v1155
        %vm1157 = vcmask 15360
        %1158 = vst.msk [vmem:[%s385] sm:$0xff] %vm1157, %v1156
        %s1159 = sadd.s32 %s21, %s22
        %s1160 = smul.u32 6, %s1159
        %p1161 = scmp.lt.s32.totalorder %s1160, 11
        %s1162 = scalar_select %p1161, %s1160, 11
        %s1163 = smul.addr %s1162, 4
        %s1164 = scalar_lea.vmem %s4, %s1163
        %p1165 = scmp.lt.s32.totalorder %s21, 1
        %s1166 = scalar_select %p1165, %s21, 1
        %s1167 = smul.addr %s1166, 8
        %s1168 = scalar_lea.vmem %s5, %s1167
        // Predicated region
        $region105: #{conv_dv_wh_forward.1} parent=91 // pred_check
          %p1169 = pneg %p154
        $region106: #{conv_dv_wh_forward.1} parent=91 // pred_check_branch
          %1171 = sbr.rel (%p1169) target = $region108
        $region107: #{conv_dv_wh_forward.1} parent=91 // pred_region
          %s1172 = sadd.s32 %s21, %s22
          %s1173 = smul.u32 6, %s1172
        $region108: #{conv_dv_wh_forward.1} parent=91 // pred_fallthru
          _
        // Predicated region
        $region109: #{conv_dv_wh_forward.1} parent=91 // pred_check
          %p1174 = pneg %p180
        $region110: #{conv_dv_wh_forward.1} parent=91 // pred_check_branch
          %1176 = sbr.rel (%p1174) target = $region112
        $region111: #{conv_dv_wh_forward.1} parent=91 // pred_region
          _
        $region112: #{conv_dv_wh_forward.1} parent=91 // pred_fallthru
          _
      $region92: #{conv_dv_wh_forward.1} parent=5 // pred_fallthru
        _
      %p1177 = scmp.le.s32.totalorder 2, %s12
      // Predicated region
      $region113: #{conv_dv_wh_forward.1} parent=5 // pred_check
        %p1178 = pneg %p1177
      $region114: #{conv_dv_wh_forward.1} parent=5 // pred_check_branch
        %1180 = sbr.rel (%p1178) target = $region116
      $region115: #{conv_dv_wh_forward.1} parent=5 // pred_region
        %s1181 = ssub.s32 %s12, 2
        // Predicated region
        $region117: #{conv_dv_wh_forward.1} parent=115 // pred_check
          %p1182 = pneg %p160
        $region118: #{conv_dv_wh_forward.1} parent=115 // pred_check_branch
          %1184 = sbr.rel (%p1182) target = $region120
        $region119: #{conv_dv_wh_forward.1} parent=115 // pred_region
          %s1185 = sadd.s32 %s23, %s24
          %s1186 = smul.u32 6, %s1185
          %p1187 = scmp.lt.s32.totalorder %s1186, 11
          %s1188 = scalar_select %p1187, %s1186, 11
          %s1189 = smul.addr %s1188, 4
          %s1190 = scalar_lea.vmem %s4, %s1189
        $region120: #{conv_dv_wh_forward.1} parent=115 // pred_fallthru
          _
        // Predicated region
        $region121: #{conv_dv_wh_forward.1} parent=115 // pred_check
          %p1191 = pneg %p186
        $region122: #{conv_dv_wh_forward.1} parent=115 // pred_check_branch
          %1193 = sbr.rel (%p1191) target = $region124
        $region123: #{conv_dv_wh_forward.1} parent=115 // pred_region
          %p1194 = scmp.lt.s32.totalorder %s23, 1
          %s1195 = scalar_select %p1194, %s23, 1
          %s1196 = smul.addr %s1195, 8
          %s1197 = scalar_lea.vmem %s5, %s1196
        $region124: #{conv_dv_wh_forward.1} parent=115 // pred_fallthru
          _
      $region116: #{conv_dv_wh_forward.1} parent=5 // pred_fallthru
        _
    $region6: #{conv_dv_wh_forward.1} parent=1 // loop_footer
      %s16 = sadd.s32 1, %s12
    $region7: #{conv_dv_wh_forward.1} parent=1 // loop_footer_branch
      %11 = sbr.rel target = $region3
    $region8: #{conv_dv_wh_forward.1} parent=1 // loop_exit
      _

</llo_original>
